<compile_context>
chip_gen: v6e
topology: v6e:2x2x1
jax: 0.10.0
libtpu: 0.0.40
codegen_flags: <defaults>
</compile_context>

<pallas_src>
import functools

import jax
import jax.numpy as jnp
import numpy as np
from jax.experimental import pallas as pl
from jax.experimental.pallas import tpu as pltpu

BN_EPS = 1e-5
LANE = 128


def _fused_encoder_kernel(x_ref, w_ref, ml_ref, mr_ref, g_ref, b_ref, o_ref,
                          *, cout, inv_cnt, l_ext):
    """Fused 3x3 conv + BatchNorm (batch stats) + ReLU, whole batch in one step.

    x_ref : (3*Cin, L) bf16  -- dy-shifted channel stack, images on the lane axis
    w_ref : (3*Cout, 3*Cin) bf16 -- rows = kx*Cout + o, cols = ky*Cin + c
    ml_ref/mr_ref : (1, L) f32 -- row-wrap masks for the dx=-1 / dx=+1 taps
    g_ref/b_ref : (Cout, 1) f32 -- BatchNorm gamma / beta
    o_ref : (Cout, L) f32
    """
    # One MXU matmul: all 3 horizontal taps x all output channels x all images.
    y = jnp.dot(w_ref[...], x_ref[...], preferred_element_type=jnp.float32)
    y_left = y[0 * cout:1 * cout, :]    # kx = 0 -> reads column w-1
    y_mid = y[1 * cout:2 * cout, :]     # kx = 1 -> reads column w
    y_right = y[2 * cout:3 * cout, :]   # kx = 2 -> reads column w+1

    # Horizontal taps as XLU lane rotations; circular wrap-around only lands on
    # masked (row-wrap / tail) lanes.  out[l] += m * y_tap[l -/+ 1].
    acc = (y_mid
           + ml_ref[...] * pltpu.roll(y_left, shift=1, axis=1)
           + mr_ref[...] * pltpu.roll(y_right, shift=l_ext - 1, axis=1))

    # Single-pass BatchNorm batch statistics.  Tail lanes of `acc` are exactly
    # zero (zero input tail + zero masks) and inv_cnt uses the true N*H*W
    # element count, so padding does not bias the statistics.
    mean = jnp.sum(acc, axis=1, keepdims=True) * inv_cnt
    ex2 = jnp.sum(acc * acc, axis=1, keepdims=True) * inv_cnt
    var = jnp.maximum(ex2 - mean * mean, 0.0)
    scale = g_ref[...] * jax.lax.rsqrt(var + BN_EPS)
    shift = b_ref[...] - mean * scale

    o_ref[...] = jnp.maximum(acc * scale + shift, 0.0)


@jax.jit
def encoder_block_forward(x_nchw, w_oihw, bias, gamma, beta):
    """Pallas implementation of EncoderBlock.forward (training-mode BN).

    x_nchw: (N, Cin, H, W) f32, w_oihw: (Cout, Cin, 3, 3), bias/gamma/beta: (Cout,).
    """
    del bias  # exactly cancelled by the training-mode BatchNorm mean subtraction
    N, Cin, H, W = x_nchw.shape
    Cout = w_oihw.shape[0]
    HW = H * W
    HW_pad = pl.cdiv(HW, LANE) * LANE       # per-image lane-padded segment
    L = N * HW_pad                          # total lane extent (all images)

    # Rough VMEM footprint check (single fused step keeps everything resident).
    vmem_est = (3 * Cin * L * 2 + Cout * L * 4 + 2 * L * 4) * 2 \
        + 4 * 3 * Cout * L * 4 + 9 * Cout * Cin * 2
    assert vmem_est < 24 * 1024 * 1024, "batch too large for the fused single-step kernel"

    # ---- wrapper glue (XLA, tiny tensors) ----------------------------------
    # Fold the 3 vertical taps into the contraction: stack dy-shifted copies of
    # the flattened image along channels (zero-filled at vertical OOB).
    x2 = x_nchw.reshape(N, Cin, HW)
    xp = jnp.pad(x2, ((0, 0), (0, 0), (W, W)))
    x_stack = jnp.concatenate(
        [xp[:, :, ky * W: ky * W + HW] for ky in range(3)], axis=1)     # (N, 3Cin, HW)
    x_stack = jnp.pad(x_stack, ((0, 0), (0, 0), (0, HW_pad - HW)))      # zero tail
    # Channel-major, lane-dense, images concatenated along the lane axis.
    x_flat = jnp.transpose(x_stack, (1, 0, 2)).reshape(3 * Cin, L).astype(jnp.bfloat16)

    # Weights (Cout, Cin, ky, kx) -> (3*Cout, 3*Cin): row = kx*Cout + o, col = ky*Cin + c.
    wmat = jnp.transpose(w_oihw, (3, 0, 2, 1)).reshape(3 * Cout, 3 * Cin).astype(jnp.bfloat16)

    # Row-wrap masks for the two horizontal taps (dx = -1 / +1); zero on tail lanes.
    r = np.arange(HW_pad)
    valid = r < HW
    ww = r % W
    ml_seg = (valid & (ww >= 1)).astype(np.float32)
    mr_seg = (valid & (ww <= W - 2)).astype(np.float32)
    m_left = jnp.asarray(np.tile(ml_seg, N)[None, :])     # (1, L)
    m_right = jnp.asarray(np.tile(mr_seg, N)[None, :])    # (1, L)

    g2 = gamma.reshape(Cout, 1).astype(jnp.float32)
    b2 = beta.reshape(Cout, 1).astype(jnp.float32)

    kernel = functools.partial(_fused_encoder_kernel, cout=Cout,
                               inv_cnt=1.0 / float(N * HW), l_ext=L)
    out_flat = pl.pallas_call(
        kernel,
        grid=(1,),
        in_specs=[
            pl.BlockSpec((3 * Cin, L), lambda i: (0, 0)),
            pl.BlockSpec((3 * Cout, 3 * Cin), lambda i: (0, 0)),
            pl.BlockSpec((1, L), lambda i: (0, 0)),
            pl.BlockSpec((1, L), lambda i: (0, 0)),
            pl.BlockSpec((Cout, 1), lambda i: (0, 0)),
            pl.BlockSpec((Cout, 1), lambda i: (0, 0)),
        ],
        out_specs=pl.BlockSpec((Cout, L), lambda i: (0, 0)),
        out_shape=jax.ShapeDtypeStruct((Cout, L), jnp.float32),
        compiler_params=pltpu.CompilerParams(
            dimension_semantics=("arbitrary",),
            vmem_limit_bytes=32 * 1024 * 1024),
    )(x_flat, wmat, m_left, m_right, g2, b2)

    # Back to PyTorch NCHW: drop lane padding, tiny XLA transpose of the result.
    out = out_flat.reshape(Cout, N, HW_pad)[:, :, :HW]
    return jnp.transpose(out, (1, 0, 2)).reshape(N, Cout, H, W)


def reference_forward(x_nchw, w_oihw, bias, gamma, beta):
    """Pure-JAX reference (matches PyTorch EncoderBlock.forward, training mode)."""
    y = jax.lax.conv_general_dilated(
        x_nchw, w_oihw, window_strides=(1, 1), padding=((1, 1), (1, 1)),
        dimension_numbers=("NCHW", "OIHW", "NCHW"))
    y = y + bias.reshape(1, -1, 1, 1)
    mean = jnp.mean(y, axis=(0, 2, 3), keepdims=True)
    var = jnp.mean((y - mean) ** 2, axis=(0, 2, 3), keepdims=True)
    y = (y - mean) * jax.lax.rsqrt(var + BN_EPS)
    y = y * gamma.reshape(1, -1, 1, 1) + beta.reshape(1, -1, 1, 1)
    return jnp.maximum(y, 0.0)


def _run_case(key, N, Cin, Cout, H, W):
    kx, kw, kb, kg, kbe = jax.random.split(key, 5)
    x = jax.random.normal(kx, (N, Cin, H, W), dtype=jnp.float32)
    conv_w = 0.1 * jax.random.normal(kw, (Cout, Cin, 3, 3), dtype=jnp.float32)
    conv_b = 0.1 * jax.random.normal(kb, (Cout,), dtype=jnp.float32)
    bn_gamma = 1.0 + 0.1 * jax.random.normal(kg, (Cout,), dtype=jnp.float32)
    bn_beta = 0.1 * jax.random.normal(kbe, (Cout,), dtype=jnp.float32)

    out = jax.block_until_ready(
        encoder_block_forward(x, conv_w, conv_b, bn_gamma, bn_beta))
    ref = jax.block_until_ready(
        reference_forward(x, conv_w, conv_b, bn_gamma, bn_beta))

    assert out.shape == (N, Cout, H, W), out.shape
    np.testing.assert_allclose(np.asarray(out), np.asarray(ref),
                               rtol=2e-2, atol=2e-2)


if __name__ == "__main__":
    key = jax.random.PRNGKey(0)
    k1, k2 = jax.random.split(key)
    # Case A: the actual MGAFModel post_fusion_encoder shapes
    # (in_channels=32, bottleneck_channels=16, 11x11 feature map, batch=2).
    _run_case(k1, N=2, Cin=32, Cout=16, H=11, W=11)
    # Case B: exercises a lane-exact spatial extent (16x16) and other channel counts.
    _run_case(k2, N=4, Cin=4, Cout=8, H=16, W=16)
    print("KERNEL_OK")
</pallas_src>

<mosaic_0001>
module attributes {stable_mosaic.version = 11 : i64} {
  func.func @_fused_encoder_kernel(%arg0: i32, %arg1: memref<96x256xbf16, #tpu.memory_space<vmem>>, %arg2: memref<48x96xbf16, #tpu.memory_space<vmem>>, %arg3: memref<1x256xf32, #tpu.memory_space<vmem>>, %arg4: memref<1x256xf32, #tpu.memory_space<vmem>>, %arg5: memref<16x1xf32, #tpu.memory_space<vmem>>, %arg6: memref<16x1xf32, #tpu.memory_space<vmem>>, %arg7: memref<16x256xf32, #tpu.memory_space<vmem>>) attributes {dimension_semantics = [#tpu.dimension_semantics<arbitrary>], iteration_bounds = array<i64: 1>, scalar_prefetch = 0 : i64, scratch_operands = 0 : i64, tpu.core_type = #tpu.core_type<tc>, window_params = [{pipeline_mode = #tpu.pipeline_mode<synchronous>, transform_indices = @transform_0, window_bounds = array<i64: 96, 256>}, {pipeline_mode = #tpu.pipeline_mode<synchronous>, transform_indices = @transform_1, window_bounds = array<i64: 48, 96>}, {pipeline_mode = #tpu.pipeline_mode<synchronous>, transform_indices = @transform_2, window_bounds = array<i64: 1, 256>}, {pipeline_mode = #tpu.pipeline_mode<synchronous>, transform_indices = @transform_3, window_bounds = array<i64: 1, 256>}, {pipeline_mode = #tpu.pipeline_mode<synchronous>, transform_indices = @transform_4, window_bounds = array<i64: 16, 1>}, {pipeline_mode = #tpu.pipeline_mode<synchronous>, transform_indices = @transform_5, window_bounds = array<i64: 16, 1>}, {pipeline_mode = #tpu.pipeline_mode<synchronous>, transform_indices = @transform_6, window_bounds = array<i64: 16, 256>}]} {
    %c0 = arith.constant 0 : index
    %c0_0 = arith.constant 0 : index
    %0 = vector.load %arg2[%c0, %c0_0] : memref<48x96xbf16, #tpu.memory_space<vmem>>, vector<48x96xbf16>
    %c0_1 = arith.constant 0 : index
    %c0_2 = arith.constant 0 : index
    %1 = vector.load %arg1[%c0_1, %c0_2] : memref<96x256xbf16, #tpu.memory_space<vmem>>, vector<96x256xbf16>
    %cst = arith.constant dense<0.000000e+00> : vector<48x256xf32>
    %2 = tpu.matmul %0, %1, %cst {dimension_numbers = #tpu.dot_dimension_numbers<[1], [0], [0], [1], [0, 0, 1, 1], [], []>} : vector<48x96xbf16>, vector<96x256xbf16>, vector<48x256xf32> -> vector<48x256xf32>
    %3 = vector.extract_strided_slice %2 {offsets = [0, 0], sizes = [16, 256], strides = [1, 1]} : vector<48x256xf32> to vector<16x256xf32>
    %4 = vector.extract_strided_slice %2 {offsets = [16, 0], sizes = [16, 256], strides = [1, 1]} : vector<48x256xf32> to vector<16x256xf32>
    %5 = vector.extract_strided_slice %2 {offsets = [32, 0], sizes = [16, 256], strides = [1, 1]} : vector<48x256xf32> to vector<16x256xf32>
    %c0_3 = arith.constant 0 : index
    %c0_4 = arith.constant 0 : index
    %6 = vector.load %arg3[%c0_3, %c0_4] : memref<1x256xf32, #tpu.memory_space<vmem>>, vector<1x256xf32>
    %c1_i32 = arith.constant 1 : i32
    %7 = tpu.dynamic_rotate %3 by %c1_i32 dim 1 : vector<16x256xf32>, i32 -> vector<16x256xf32>
    %8 = vector.broadcast %6 : vector<1x256xf32> to vector<16x256xf32>
    %9 = arith.mulf %8, %7 : vector<16x256xf32>
    %10 = arith.addf %4, %9 : vector<16x256xf32>
    %c0_5 = arith.constant 0 : index
    %c0_6 = arith.constant 0 : index
    %11 = vector.load %arg4[%c0_5, %c0_6] : memref<1x256xf32, #tpu.memory_space<vmem>>, vector<1x256xf32>
    %c255_i32 = arith.constant 255 : i32
    %12 = tpu.dynamic_rotate %5 by %c255_i32 dim 1 : vector<16x256xf32>, i32 -> vector<16x256xf32>
    %13 = vector.broadcast %11 : vector<1x256xf32> to vector<16x256xf32>
    %14 = arith.mulf %13, %12 : vector<16x256xf32>
    %15 = arith.addf %10, %14 : vector<16x256xf32>
    %cst_7 = arith.constant dense<0.000000e+00> : vector<16xf32>
    %16 = vector.multi_reduction <add>, %15, %cst_7 [1] : vector<16x256xf32> to vector<16xf32>
    %17 = vector.shape_cast %16 : vector<16xf32> to vector<16x1xf32>
    %cst_8 = arith.constant 0.00413223123 : f32
    %18 = vector.broadcast %cst_8 : f32 to vector<16x1xf32>
    %19 = arith.mulf %17, %18 : vector<16x1xf32>
    %20 = arith.mulf %15, %15 : vector<16x256xf32>
    %cst_9 = arith.constant dense<0.000000e+00> : vector<16xf32>
    %21 = vector.multi_reduction <add>, %20, %cst_9 [1] : vector<16x256xf32> to vector<16xf32>
    %22 = vector.shape_cast %21 : vector<16xf32> to vector<16x1xf32>
    %cst_10 = arith.constant 0.00413223123 : f32
    %23 = vector.broadcast %cst_10 : f32 to vector<16x1xf32>
    %24 = arith.mulf %22, %23 : vector<16x1xf32>
    %25 = arith.mulf %19, %19 : vector<16x1xf32>
    %26 = arith.subf %24, %25 : vector<16x1xf32>
    %cst_11 = arith.constant 0.000000e+00 : f32
    %27 = vector.broadcast %cst_11 : f32 to vector<16x1xf32>
    %28 = arith.maximumf %26, %27 : vector<16x1xf32>
    %c0_12 = arith.constant 0 : index
    %c0_13 = arith.constant 0 : index
    %29 = vector.load %arg5[%c0_12, %c0_13] : memref<16x1xf32, #tpu.memory_space<vmem>>, vector<16x1xf32>
    %cst_14 = arith.constant 9.99999974E-6 : f32
    %30 = vector.broadcast %cst_14 : f32 to vector<16x1xf32>
    %31 = arith.addf %28, %30 : vector<16x1xf32>
    %32 = math.rsqrt %31 : vector<16x1xf32>
    %33 = arith.mulf %29, %32 : vector<16x1xf32>
    %c0_15 = arith.constant 0 : index
    %c0_16 = arith.constant 0 : index
    %34 = vector.load %arg6[%c0_15, %c0_16] : memref<16x1xf32, #tpu.memory_space<vmem>>, vector<16x1xf32>
    %35 = arith.mulf %19, %33 : vector<16x1xf32>
    %36 = arith.subf %34, %35 : vector<16x1xf32>
    %37 = vector.broadcast %33 : vector<16x1xf32> to vector<16x256xf32>
    %38 = arith.mulf %15, %37 : vector<16x256xf32>
    %39 = vector.broadcast %36 : vector<16x1xf32> to vector<16x256xf32>
    %40 = arith.addf %38, %39 : vector<16x256xf32>
    %cst_17 = arith.constant 0.000000e+00 : f32
    %41 = vector.broadcast %cst_17 : f32 to vector<16x256xf32>
    %42 = arith.maximumf %40, %41 : vector<16x256xf32>
    %c0_18 = arith.constant 0 : index
    %c0_19 = arith.constant 0 : index
    %43 = vector.load %arg7[%c0_18, %c0_19] : memref<16x256xf32, #tpu.memory_space<vmem>>, vector<16x256xf32>
    tpu.vector_store %arg7[%c0_18, %c0_19], %42 {strides = array<i32>} : memref<16x256xf32, #tpu.memory_space<vmem>>, vector<16x256xf32>,
    return
  }
  func.func @transform_0(%arg0: i32) -> (i32, i32) {
    %c0_i32 = arith.constant 0 : i32
    %c0_i32_0 = arith.constant 0 : i32
    %c0_i32_1 = arith.constant 0 : i32
    return %c0_i32, %c0_i32_0 : i32, i32
  }
  func.func @transform_1(%arg0: i32) -> (i32, i32) {
    %c0_i32 = arith.constant 0 : i32
    %c0_i32_0 = arith.constant 0 : i32
    %c0_i32_1 = arith.constant 0 : i32
    return %c0_i32, %c0_i32_0 : i32, i32
  }
  func.func @transform_2(%arg0: i32) -> (i32, i32) {
    %c0_i32 = arith.constant 0 : i32
    %c0_i32_0 = arith.constant 0 : i32
    %c0_i32_1 = arith.constant 0 : i32
    return %c0_i32, %c0_i32_0 : i32, i32
  }
  func.func @transform_3(%arg0: i32) -> (i32, i32) {
    %c0_i32 = arith.constant 0 : i32
    %c0_i32_0 = arith.constant 0 : i32
    %c0_i32_1 = arith.constant 0 : i32
    return %c0_i32, %c0_i32_0 : i32, i32
  }
  func.func @transform_4(%arg0: i32) -> (i32, i32) {
    %c0_i32 = arith.constant 0 : i32
    %c0_i32_0 = arith.constant 0 : i32
    %c0_i32_1 = arith.constant 0 : i32
    return %c0_i32, %c0_i32_0 : i32, i32
  }
  func.func @transform_5(%arg0: i32) -> (i32, i32) {
    %c0_i32 = arith.constant 0 : i32
    %c0_i32_0 = arith.constant 0 : i32
    %c0_i32_1 = arith.constant 0 : i32
    return %c0_i32, %c0_i32_0 : i32, i32
  }
  func.func @transform_6(%arg0: i32) -> (i32, i32) {
    %c0_i32 = arith.constant 0 : i32
    %c0_i32_0 = arith.constant 0 : i32
    %c0_i32_1 = arith.constant 0 : i32
    return %c0_i32, %c0_i32_0 : i32, i32
  }
}

</mosaic_0001>

<llo_original>
// kernel: encoder_block_forward.1
$region0: #{encoder_block_forward.1}
  #allocation0 [shape = 'u32[]', space=smem, size = 0x4, offset = 0x4, fixed_abs, tag = 'smem constant byte address 0x4 - core index']
  #allocation1 [shape = 'u32[144,128]{1,0:T(1,128)}', space=vmem, size = 0x12000, scoped, tag = 'internal scratch']
  %s0 = inlined_call_operand.vmem [shape: bf16[96,256], index: 0, kind: input, shape index: {}]
  %s1 = inlined_call_operand.vmem [shape: bf16[48,96], index: 1, kind: input, shape index: {}]
  %s2 = inlined_call_operand.vmem [shape: f32[1,256], index: 2, kind: input, shape index: {}]
  %s3 = inlined_call_operand.vmem [shape: f32[1,256], index: 3, kind: input, shape index: {}]
  %s4 = inlined_call_operand.vmem [shape: f32[16,1], index: 4, kind: input, shape index: {}]
  %s5 = inlined_call_operand.vmem [shape: f32[16,1], index: 5, kind: input, shape index: {}]
  %s6 = inlined_call_operand.vmem [shape: f32[16,256], index: 6, kind: output, shape index: {}]
  %s7 = sld [smem:[#allocation0]]
  $region34: #{encoder_block_forward.1} parent=0
    _
  %s9 = ssub.s32 1, %s7
  %s10 = scalar_select 0, %s9, %s7
  // Predicated region
  $region2: #{encoder_block_forward.1} parent=0 // pred_check
    _
  $region3: #{encoder_block_forward.1} parent=0 // pred_check_branch
    %12 = sbr.rel (0) target = $region5
  $region4: #{encoder_block_forward.1} parent=0 // pred_region
    _
  $region5: #{encoder_block_forward.1} parent=0 // pred_fallthru
    _
  // Predicated region
  $region6: #{encoder_block_forward.1} parent=0 // pred_check
    _
  $region7: #{encoder_block_forward.1} parent=0 // pred_check_branch
    %14 = sbr.rel (0) target = $region9
  $region8: #{encoder_block_forward.1} parent=0 // pred_region
    _
  $region9: #{encoder_block_forward.1} parent=0 // pred_fallthru
    _
  // Predicated region
  $region10: #{encoder_block_forward.1} parent=0 // pred_check
    _
  $region11: #{encoder_block_forward.1} parent=0 // pred_check_branch
    %16 = sbr.rel (0) target = $region13
  $region12: #{encoder_block_forward.1} parent=0 // pred_region
    _
  $region13: #{encoder_block_forward.1} parent=0 // pred_fallthru
    _
  // Predicated region
  $region14: #{encoder_block_forward.1} parent=0 // pred_check
    _
  $region15: #{encoder_block_forward.1} parent=0 // pred_check_branch
    %18 = sbr.rel (0) target = $region17
  $region16: #{encoder_block_forward.1} parent=0 // pred_region
    _
  $region17: #{encoder_block_forward.1} parent=0 // pred_fallthru
    _
  // Predicated region
  $region18: #{encoder_block_forward.1} parent=0 // pred_check
    _
  $region19: #{encoder_block_forward.1} parent=0 // pred_check_branch
    %20 = sbr.rel (0) target = $region21
  $region20: #{encoder_block_forward.1} parent=0 // pred_region
    _
  $region21: #{encoder_block_forward.1} parent=0 // pred_fallthru
    _
  // Predicated region
  $region22: #{encoder_block_forward.1} parent=0 // pred_check
    _
  $region23: #{encoder_block_forward.1} parent=0 // pred_check_branch
    %22 = sbr.rel (0) target = $region25
  $region24: #{encoder_block_forward.1} parent=0 // pred_region
    _
  $region25: #{encoder_block_forward.1} parent=0 // pred_fallthru
    _
  %v24 = vld [vmem:[%s1] sm:$0xf]
  %v25 = vld [vmem:[%s1 + $0x4] sm:$0xf]
  %v26 = vld [vmem:[%s1 + $0x8] sm:$0xf]
  %v27 = vld [vmem:[%s1 + $0xc] sm:$0xf]
  %v28 = vld [vmem:[%s1 + $0x10] sm:$0xf]
  %v29 = vld [vmem:[%s1 + $0x14] sm:$0xf]
  %v30 = vld [vmem:[%s0] sm:$0xff]
  %v31 = vld [vmem:[%s0 + $0x8] sm:$0xff]
  %v32 = vld [vmem:[%s0 + $0x10] sm:$0xff]
  %v33 = vld [vmem:[%s0 + $0x18] sm:$0xff]
  %v34 = vld [vmem:[%s0 + $0x20] sm:$0xff]
  %v35 = vld [vmem:[%s0 + $0x28] sm:$0xff]
  %v36 = vld [vmem:[%s0 + $0x30] sm:$0xff]
  %v37 = vld [vmem:[%s0 + $0x38] sm:$0xff]
  %v38 = vld [vmem:[%s0 + $0x40] sm:$0xff]
  %v39 = vld [vmem:[%s0 + $0x48] sm:$0xff]
  %v40 = vld [vmem:[%s0 + $0x50] sm:$0xff]
  %v41 = vld [vmem:[%s0 + $0x58] sm:$0xff]
  %v48 = vunpack.c.l.b16 %v24
  %v49 = vunpack.c.l.b16 %v25
  %v50 = vunpack.c.l.b16 %v26
  %v51 = vunpack.c.l.b16 %v27
  %v52 = vunpack.c.l.b16 %v28
  %v53 = vunpack.c.l.b16 %v29
  %v54 = vpack.c.b16 %v49, %v48
  %v55 = vpack.c.b16 %v51, %v50
  %v56 = vpack.c.b16 %v53, %v52
  %v69 = vunpack.c.l.b16 %v30
  %v70 = vunpack.c.h.b16 %v30
  %v71 = vunpack.c.l.b16 %v31
  %v72 = vunpack.c.h.b16 %v31
  %v73 = vunpack.c.l.b16 %v32
  %v74 = vunpack.c.h.b16 %v32
  %v75 = vunpack.c.l.b16 %v33
  %v76 = vunpack.c.h.b16 %v33
  %v77 = vunpack.c.l.b16 %v34
  %v78 = vunpack.c.h.b16 %v34
  %v79 = vunpack.c.l.b16 %v35
  %v80 = vunpack.c.h.b16 %v35
  %v81 = vunpack.c.l.b16 %v36
  %v82 = vunpack.c.h.b16 %v36
  %v83 = vunpack.c.l.b16 %v37
  %v84 = vunpack.c.h.b16 %v37
  %v85 = vunpack.c.l.b16 %v38
  %v86 = vunpack.c.h.b16 %v38
  %v87 = vunpack.c.l.b16 %v39
  %v88 = vunpack.c.h.b16 %v39
  %v89 = vunpack.c.l.b16 %v40
  %v90 = vunpack.c.h.b16 %v40
  %v91 = vunpack.c.l.b16 %v41
  %v92 = vunpack.c.h.b16 %v41
  %v93 = vpack.c.b16 %v71, %v69
  %v94 = vpack.c.b16 %v72, %v70
  %v95 = vpack.c.b16 %v75, %v73
  %v96 = vpack.c.b16 %v76, %v74
  %v97 = vpack.c.b16 %v79, %v77
  %v98 = vpack.c.b16 %v80, %v78
  %v99 = vpack.c.b16 %v83, %v81
  %v100 = vpack.c.b16 %v84, %v82
  %v101 = vpack.c.b16 %v87, %v85
  %v102 = vpack.c.b16 %v88, %v86
  %v103 = vpack.c.b16 %v91, %v89
  %v104 = vpack.c.b16 %v92, %v90
  %vm117 = vcmask 785408
  %v119 = vsel %vm117, %v54, 0
  %v122 = vsel %vm117, %v55, 0
  %v125 = vsel %vm117, %v56, 0
  %127 = vmatprep.subr.bf16.mxu0 0
  %128 = vmatpush1.bf16.msra.mxu0 0
  %129 = vmatprep.subr.bf16.mxu0 0
  %130 = vmatpush1.bf16.msra.mxu0 0
  %131 = vmatprep.subr.bf16.mxu0 %v104
  %132 = vmatpush1.bf16.msra.mxu0 %v103
  %133 = vmatprep.subr.bf16.mxu0 %v102
  %134 = vmatpush1.bf16.msra.mxu0 %v101
  %135 = vmatprep.subr.bf16.mxu0 %v100
  %136 = vmatpush1.bf16.msra.mxu0 %v99
  %137 = vmatprep.subr.bf16.mxu0 %v98
  %138 = vmatpush1.bf16.msra.mxu0 %v97
  %139 = vmatprep.subr.bf16.mxu0 %v96
  %140 = vmatpush1.bf16.msra.mxu0 %v95
  %141 = vmatprep.subr.bf16.mxu0 %v94
  %142 = vmatpush1.bf16.msra.mxu0 %v93
  %143 = vmatprep.subr.bf16.mxu0 0
  %144 = vmatpush2.bf16.msra.mxu0 0
  %145 = vmatprep.subr.bf16.mxu0 0
  %146 = vmatpush2.bf16.msra.mxu0 0
  %147 = vmatprep.subr.bf16.mxu0 0
  %148 = vmatpush2.bf16.msra.mxu0 0
  %149 = vmatprep.subr.bf16.mxu0 0
  %150 = vmatpush2.bf16.msra.mxu0 0
  %151 = vmatprep.subr.bf16.mxu0 0
  %152 = vmatpush2.bf16.msra.mxu0 0
  %153 = vmatprep.subr.bf16.mxu0 0
  %154 = vmatpush2.bf16.msra.mxu0 0
  %155 = vmatprep.subr.bf16.mxu0 0
  %156 = vmatpush2.bf16.msra.mxu0 0
  %157 = vmatprep.subr.bf16.mxu0 0
  %158 = vmatpush2.bf16.msra.mxu0 0
  %159 = vmatprep.mubr.bf16.mxu0 0
  %160 = vmatmul.mubr.bf16.gmra.mxu0 %v119
  %v161 = vpop.f32.mrf.mxu0
  %v162 = vadd.f32 0.0, %v161
  %v163 = vpop.f32.mrf.mxu0
  %v164 = vadd.f32 0.0, %v163
  %v165 = vpop.f32.mrf.mxu0
  %v166 = vadd.f32 0.0, %v165
  %v167 = vpop.f32.mrf.mxu0
  %v168 = vadd.f32 0.0, %v167
  %169 = vmatprep.mubr.bf16.mxu0 0
  %170 = vmatmul.mubr.bf16.gmra.mxu0 %v122
  %v171 = vpop.f32.mrf.mxu0
  %v172 = vadd.f32 0.0, %v171
  %v173 = vpop.f32.mrf.mxu0
  %v174 = vadd.f32 0.0, %v173
  %v175 = vpop.f32.mrf.mxu0
  %v176 = vadd.f32 0.0, %v175
  %v177 = vpop.f32.mrf.mxu0
  %v178 = vadd.f32 0.0, %v177
  %179 = vmatprep.mubr.bf16.mxu0 0
  %180 = vmatmul.mubr.bf16.gmra.mxu0 %v125
  %v181 = vpop.f32.mrf.mxu0
  %v182 = vadd.f32 0.0, %v181
  %v183 = vpop.f32.mrf.mxu0
  %v184 = vadd.f32 0.0, %v183
  %v185 = vpop.f32.mrf.mxu0
  %v186 = vadd.f32 0.0, %v185
  %v187 = vpop.f32.mrf.mxu0
  %v188 = vadd.f32 0.0, %v187
  %189 = vdwg.mxu0
  %v190 = vld [vmem:[%s2] sm:$0x3]
  %191 = vrot.lane.b32.xlu0 %v162, 1
  %v192 = vpop.permute.xlu0 %191
  %193 = vrot.lane.b32.xlu0 %v166, 1
  %v194 = vpop.permute.xlu0 %193
  %195 = vrot.lane.b32.xlu0 %v164, 1
  %v196 = vpop.permute.xlu0 %195
  %197 = vrot.lane.b32.xlu0 %v168, 1
  %v198 = vpop.permute.xlu0 %197
  %v199 = vlaneseq
  %v200 = vand.u32 %v199, 127
  %vm201 = vcmp.lt.s32.totalorder %v200, 1
  %v202 = vsel %vm201, %v192, %v196
  %v203 = vsel %vm201, %v194, %v198
  %v204 = vsel %vm201, %v196, %v192
  %v205 = vsel %vm201, %v198, %v194
  %v207 = vlaneseq
  %v208 = vshrl.u32 %v207, 7
  %v209 = vsub.s32 0, %v208
  %v210 = vrot.slane %v190, %v209
  %v211 = vlaneseq
  %v212 = vshrl.u32 %v211, 7
  %v213 = vsub.s32 1, %v212
  %v214 = vrot.slane %v190, %v213
  %v217 = vmul.f32 %v210, %v204
  %v218 = vmul.f32 %v214, %v202
  %v219 = vmul.f32 %v210, %v205
  %v220 = vmul.f32 %v214, %v203
  %v221 = vadd.f32 %v172, %v217
  %v222 = vadd.f32 %v174, %v218
  %v223 = vadd.f32 %v176, %v219
  %v224 = vadd.f32 %v178, %v220
  %v225 = vld [vmem:[%s3] sm:$0x3]
  %226 = vrot.lane.b32.xlu0 %v182, 127
  %v227 = vpop.permute.xlu0 %226
  %228 = vrot.lane.b32.xlu0 %v186, 127
  %v229 = vpop.permute.xlu0 %228
  %230 = vrot.lane.b32.xlu0 %v184, 127
  %v231 = vpop.permute.xlu0 %230
  %232 = vrot.lane.b32.xlu0 %v188, 127
  %v233 = vpop.permute.xlu0 %232
  %vm234 = vcmp.lt.s32.totalorder %v200, 127
  %v235 = vsel %vm234, %v227, %v231
  %v236 = vsel %vm234, %v229, %v233
  %v237 = vsel %vm234, %v231, %v227
  %v238 = vsel %vm234, %v233, %v229
  %v240 = vlaneseq
  %v241 = vshrl.u32 %v240, 7
  %v242 = vsub.s32 0, %v241
  %v243 = vrot.slane %v225, %v242
  %v244 = vlaneseq
  %v245 = vshrl.u32 %v244, 7
  %v246 = vsub.s32 1, %v245
  %v247 = vrot.slane %v225, %v246
  %v250 = vmul.f32 %v243, %v235
  %v251 = vmul.f32 %v247, %v237
  %v252 = vmul.f32 %v243, %v236
  %v253 = vmul.f32 %v247, %v238
  %v254 = vadd.f32 %v221, %v250
  %v255 = vadd.f32 %v222, %v251
  %v256 = vadd.f32 %v223, %v252
  %v257 = vadd.f32 %v224, %v253
  %v258 = vadd.f32 %v254, %v255
  %259 = vadd.xlane.f32.xlu0 %v258
  %v260 = vpop.xlane.xlu0 %259
  %v261 = vadd.f32 %v256, %v257
  %262 = vadd.xlane.f32.xlu0 %v261
  %v263 = vpop.xlane.xlu0 %262
  %v264 = vmul.f32 %v260, 0.004132231
  %v265 = vmul.f32 %v263, 0.004132231
  %v266 = vmul.f32 %v254, %v254
  %v267 = vmul.f32 %v255, %v255
  %v268 = vmul.f32 %v256, %v256
  %v269 = vmul.f32 %v257, %v257
  %v270 = vadd.f32 %v266, %v267
  %271 = vadd.xlane.f32.xlu0 %v270
  %v272 = vpop.xlane.xlu0 %271
  %v273 = vadd.f32 %v268, %v269
  %274 = vadd.xlane.f32.xlu0 %v273
  %v275 = vpop.xlane.xlu0 %274
  %v276 = vmul.f32 %v272, 0.004132231
  %v277 = vmul.f32 %v275, 0.004132231
  %v278 = vmul.f32 %v264, %v264
  %v279 = vmul.f32 %v265, %v265
  %v280 = vsub.f32 %v276, %v278
  %v281 = vsub.f32 %v277, %v279
  %v282 = vmax.f32 %v280, 0.0
  %v283 = vmax.f32 %v281, 0.0
  %v284 = vld [vmem:[%s4] sm:$0xff]
  %v285 = vld [vmem:[%s4 + $0x8] sm:$0xff]
  %v286 = vadd.f32 %v282, 1e-05
  %v287 = vadd.f32 %v283, 1e-05
  %v288 = vrsqrt.pop %v286
  %v289 = vrsqrt.pop %v287
  %v290 = vmul.f32 %v284, %v288
  %v291 = vmul.f32 %v285, %v289
  %v292 = vld [vmem:[%s5] sm:$0xff]
  %v293 = vld [vmem:[%s5 + $0x8] sm:$0xff]
  %v294 = vmul.f32 %v264, %v290
  %v295 = vmul.f32 %v265, %v291
  %v296 = vsub.f32 %v292, %v294
  %v297 = vsub.f32 %v293, %v295
  %299 = vset.pattern.permute.xlu0 0
  %300 = vperm.xlu0 %299, %v290
  %v301 = vpop.permute.xlu0 %300
  %304 = vset.pattern.permute.xlu0 0
  %305 = vperm.xlu0 %304, %v291
  %v306 = vpop.permute.xlu0 %305
  %v308 = vmul.f32 %v254, %v301
  %v309 = vmul.f32 %v255, %v301
  %v310 = vmul.f32 %v256, %v306
  %v311 = vmul.f32 %v257, %v306
  %313 = vset.pattern.permute.xlu0 0
  %314 = vperm.xlu0 %313, %v296
  %v315 = vpop.permute.xlu0 %314
  %318 = vset.pattern.permute.xlu0 0
  %319 = vperm.xlu0 %318, %v297
  %v320 = vpop.permute.xlu0 %319
  %v322 = vadd.f32 %v308, %v315
  %v323 = vadd.f32 %v309, %v315
  %v324 = vadd.f32 %v310, %v320
  %v325 = vadd.f32 %v311, %v320
  %v326 = vmax.f32 %v322, 0.0
  %v327 = vmax.f32 %v323, 0.0
  %v328 = vmax.f32 %v324, 0.0
  %v329 = vmax.f32 %v325, 0.0
  %330 = vst [vmem:[%s6] sm:$0xff] %v326
  %331 = vst [vmem:[%s6 + $0x8] sm:$0xff] %v327
  %332 = vst [vmem:[%s6 + $0x10] sm:$0xff] %v328
  %333 = vst [vmem:[%s6 + $0x18] sm:$0xff] %v329
  // Predicated region
  $region26: #{encoder_block_forward.1} parent=0 // pred_check
    _
  $region27: #{encoder_block_forward.1} parent=0 // pred_check_branch
    %335 = sbr.rel (0) target = $region29
  $region28: #{encoder_block_forward.1} parent=0 // pred_region
    _
  $region29: #{encoder_block_forward.1} parent=0 // pred_fallthru
    _
  // Predicated region
  $region30: #{encoder_block_forward.1} parent=0 // pred_check
    _
  $region31: #{encoder_block_forward.1} parent=0 // pred_check_branch
    %337 = sbr.rel (0) target = $region33
  $region32: #{encoder_block_forward.1} parent=0 // pred_region
    _
  $region33: #{encoder_block_forward.1} parent=0 // pred_fallthru
    _

</llo_original>
